<compile_context>
chip_gen: v7x
topology: tpu7x:2x2x1
jax: 0.10.0
libtpu: 0.0.40
codegen_flags: <defaults>
</compile_context>

<pallas_src>
import functools
from collections import deque

import jax
import jax.numpy as jnp
from jax.experimental import pallas as pl
from jax.experimental.pallas import tpu as pltpu


# ----------------------------------------------------------------------------
# FIFO combination-order bookkeeping (static, wrapper-side)
# ----------------------------------------------------------------------------
def _fifo_flat_index_table(ms):
    """Simulate BF_dD.forward's FIFO pairwise tensor-product combination on
    index tuples.  Returns d python lists (length prod(ms)); list i gives, for
    every flattened output column, the center index used in dimension i."""
    d = len(ms)
    dq = deque([[{i: j} for j in range(m)] for i, m in enumerate(ms)])
    while len(dq) > 1:
        a = dq.popleft()
        b = dq.popleft()
        # out[:, ia*len(b) + ib] = a[:, ia] * b[:, ib]  (same as comb_meth)
        dq.append([{**ia, **ib} for ia in a for ib in b])
    flat = dq.pop()
    return [[entry.get(i, 0) for entry in flat] for i in range(d)]


# ----------------------------------------------------------------------------
# Fused Pallas kernel
# ----------------------------------------------------------------------------
def _fused_bf_dd_kernel(x_ref, c_ref, o_ref, *, d, sqrt_gammas, sub):
    """x_ref: (tn, d) coords; c_ref: (d, p) sqrt(gamma)-scaled, FIFO-flattened
    center table; o_ref: (tn, p) combined interpolation matrix.

    out[r, k] = exp(-sum_i (sqrt(g_i)*x[r,i] - C[i,k])^2)
    The tile is processed in `sub`-row chunks; each chunk is stored as soon as
    it is computed so live values never exceed ~sub*p floats."""
    tn = o_ref.shape[0]
    n_sub = tn // sub
    c = c_ref[...]                                     # (d, p) -- a few vregs

    def body(r, carry):
        row0 = r * sub
        if not isinstance(row0, int):
            row0 = pl.multiple_of(row0, sub)           # aligned dynamic offset
        xb = x_ref[pl.ds(row0, sub), :]                # (sub, d)
        acc = None
        for i in range(d):                             # static, small d
            xi = xb[:, i:i + 1] * sqrt_gammas[i]       # (sub, 1) tiny scale
            diff = xi - c[i:i + 1, :]                  # (sub, p) lane-dense
            sq = diff * diff
            acc = sq if acc is None else acc + sq
        o_ref[pl.ds(row0, sub), :] = jnp.exp(-acc).astype(o_ref.dtype)
        return carry

    jax.lax.fori_loop(0, n_sub, body, 0, unroll=min(n_sub, 8))


# ----------------------------------------------------------------------------
# Tiling / VMEM policy
# ----------------------------------------------------------------------------
_SUB_ROWS = 128   # in-kernel row chunk (bounds live values; multiple of 8)


def _hw_info():
    vmem_cap = 64 << 20          # conservative fallback = v7x per-TC VMEM
    kind = ""
    try:
        vmem_cap = int(getattr(pltpu.get_tpu_info(), "vmem_capacity_bytes",
                                vmem_cap))
    except Exception:
        pass
    try:
        kind = jax.devices()[0].device_kind.lower()
    except Exception:
        pass
    return vmem_cap, kind


def _choose_tiles(n, p, d, out_bytes):
    vmem_cap, kind = _hw_info()
    # In-kernel chunk size.
    sub = _SUB_ROWS if n >= _SUB_ROWS else max(8, ((n + 7) // 8) * 8)
    # Generation-aware budget for the double-buffered pipeline blocks
    # (v7x 64 MiB physical vs v5e/v6e 128 MiB).
    block_budget = min(int(0.45 * vmem_cap), 56 << 20)
    # Bytes per tile row: dbl-buffered output + lane-padded (tn, d<=128) coords.
    per_row = 2 * p * out_bytes + 2 * 128 * 4
    tn = min(4096, max(sub, block_budget // per_row))
    tn = max(sub, (tn // sub) * sub)
    # Never pad N past one chunk of slack.
    tn = min(tn, pl.cdiv(n, sub) * sub)
    # v7x has 2 TensorCores per chip: keep >= 8 grid steps so both stay
    # pipelined; single-TC parts (v5e/v6e) are never force-split.
    if "v7" in kind and n >= 8 * sub:
        tn = min(tn, max(sub, pl.cdiv(pl.cdiv(n, 8), sub) * sub))
    n_pad = pl.cdiv(n, tn) * tn
    grid = n_pad // tn
    footprint = (2 * tn * p * out_bytes      # output block, double-buffered
                 + 2 * tn * 512              # lane-padded coord block storage
                 + 2 * 8 * p * 4             # centers block
                 + 4 * sub * p * 4)          # live-value headroom
    vmem_limit = int(min(max(footprint + (8 << 20), 16 << 20),
                         int(0.9 * vmem_cap)))
    return sub, tn, n_pad, grid, vmem_limit


# ----------------------------------------------------------------------------
# Wrapper
# ----------------------------------------------------------------------------
def bf_dd_forward(x_list, centers_list, gammas, out_dtype=jnp.float32):
    """x_list: d arrays [N]; centers_list: d arrays [M_i]; gammas: d floats
    -> [N, prod(M_i)] combined interpolation matrix (FIFO flattening order)."""
    d = len(x_list)
    n = int(x_list[0].shape[0])
    ms = tuple(int(c.shape[0]) for c in centers_list)
    p = 1
    for m in ms:
        p *= m
    # Note: if p is not a multiple of 128 the output stores become masked
    # partial-lane stores (legal, slower).  Pick per-dim counts whose product
    # is a multiple of 128 when possible.

    sg = tuple(float(g) ** 0.5 for g in gammas)
    cols = _fifo_flat_index_table(ms)                  # static index plumbing
    # Pre-scaled, FIFO-order-flattened per-dimension center table (d, p).
    c_full = jnp.stack(
        [sg[i] * jnp.asarray(centers_list[i], jnp.float32)[jnp.asarray(cols[i])]
         for i in range(d)], axis=0)

    x2 = jnp.stack([jnp.asarray(xi, jnp.float32) for xi in x_list], axis=1)

    out_bytes = jnp.dtype(out_dtype).itemsize
    sub, tn, n_pad, grid, vmem_limit = _choose_tiles(n, p, d, out_bytes)
    if n_pad != n:                                     # ragged N: pad + slice
        x2 = jnp.pad(x2, ((0, n_pad - n), (0, 0)))

    out = pl.pallas_call(
        functools.partial(_fused_bf_dd_kernel, d=d, sqrt_gammas=sg, sub=sub),
        out_shape=jax.ShapeDtypeStruct((n_pad, p), out_dtype),
        grid=(grid,),
        in_specs=[
            pl.BlockSpec((tn, d), lambda i: (i, 0)),   # packed coords
            pl.BlockSpec((d, p), lambda i: (0, 0)),    # tiny centers, resident
        ],
        out_specs=pl.BlockSpec((tn, p), lambda i: (i, 0)),
        compiler_params=pltpu.CompilerParams(
            dimension_semantics=("parallel",),
            vmem_limit_bytes=vmem_limit,
        ),
    )(x2, c_full)
    return out[:n] if n_pad != n else out


# ----------------------------------------------------------------------------
# Module analogues
# ----------------------------------------------------------------------------
class BF1DGaussian:
    """Concrete BF_1D: Gaussian RBF basis with fixed, deterministic centers."""

    def __init__(self, num_bf, gamma=8.0):
        self.centers = jnp.linspace(0.0, 1.0, num_bf, dtype=jnp.float32)
        self.gamma = float(gamma)
        self.levels = [num_bf]

    def __call__(self, x):
        diff = x[:, None].astype(jnp.float32) - self.centers[None, :]
        return jnp.exp(-self.gamma * diff * diff)


class BF_dD_TensorProduct:
    """Concrete BF_dD child with tensor-product combination; forward() is a
    single fused Pallas call tiled over evaluation points."""

    def __init__(self, bfs_1D):
        self.bfs_1D = bfs_1D
        self.bf_num = self.get_bf_num()

    def get_bf_num(self):
        num = 1
        for bf in self.bfs_1D:
            num *= int(bf.centers.shape[0])
        return num

    def comb_meth(self, evals_a, evals_b, levels_a, levels_b):
        # API parity with the PyTorch base class (unfused path).
        n = evals_a.shape[0]
        return (evals_a[:, :, None] * evals_b[:, None, :]).reshape(n, -1), None

    def forward(self, x, out_dtype=jnp.float32):
        # TODO(synk): `levels` bookkeeping from the reference forward is not
        # needed by the tensor-product combination and is dropped here.
        # TODO(synk): if the consumer immediately contracts the result with a
        # coefficient matrix, fuse that matmul into the kernel (MXU) instead of
        # materializing [N, p] in HBM.
        centers = [bf.centers for bf in self.bfs_1D]
        gammas = [bf.gamma for bf in self.bfs_1D]
        return bf_dd_forward(list(x), centers, gammas, out_dtype=out_dtype)


# ----------------------------------------------------------------------------
# Pure-JAX reference (FIFO order, same flattening)
# ----------------------------------------------------------------------------
def reference_forward(x_list, bfs):
    evals = deque()
    for bf, xi in zip(bfs, x_list):
        diff = xi[:, None] - bf.centers[None, :]
        evals.append(jnp.exp(-bf.gamma * diff * diff))
    while len(evals) > 1:
        a = evals.popleft()
        b = evals.popleft()
        n = a.shape[0]
        evals.append((a[:, :, None] * b[:, None, :]).reshape(n, -1))
    return evals.pop()


if __name__ == "__main__":
    M_per_dim = (8, 8, 4)          # p = 256 (multiple of 128 -> lane-dense)
    bfs = [BF1DGaussian(m, gamma=8.0) for m in M_per_dim]
    model = BF_dD_TensorProduct(bfs)

    # Case 1: small N, single in-kernel chunk.
    N = 16
    keys = jax.random.split(jax.random.PRNGKey(0), len(M_per_dim))
    x_list = [jax.random.uniform(k, (N,), dtype=jnp.float32) for k in keys]
    out = jax.block_until_ready(model.forward(x_list))
    ref = reference_forward(x_list, bfs)
    assert out.shape == (N, model.bf_num), (out.shape, model.bf_num)
    assert jnp.allclose(out, ref, atol=1e-5, rtol=1e-5), "mismatch (N=16)"

    # Case 2: ragged N (pad + slice path).
    N2 = 19
    keys2 = jax.random.split(jax.random.PRNGKey(1), len(M_per_dim))
    x_list2 = [jax.random.uniform(k, (N2,), dtype=jnp.float32) for k in keys2]
    out2 = jax.block_until_ready(model.forward(x_list2))
    ref2 = reference_forward(x_list2, bfs)
    assert out2.shape == (N2, model.bf_num), (out2.shape, model.bf_num)
    assert jnp.allclose(out2, ref2, atol=1e-5, rtol=1e-5), "mismatch (ragged N)"

    # Case 3: multi-chunk in-kernel loop (N > 128) with ragged tail.
    N3 = 300
    keys3 = jax.random.split(jax.random.PRNGKey(2), len(M_per_dim))
    x_list3 = [jax.random.uniform(k, (N3,), dtype=jnp.float32) for k in keys3]
    out3 = jax.block_until_ready(model.forward(x_list3))
    ref3 = reference_forward(x_list3, bfs)
    assert out3.shape == (N3, model.bf_num), (out3.shape, model.bf_num)
    assert jnp.allclose(out3, ref3, atol=1e-5, rtol=1e-5), "mismatch (N=300)"

    # Case 4: bf16 output path (halved HBM writeback).
    out_bf16 = jax.block_until_ready(model.forward(x_list, out_dtype=jnp.bfloat16))
    assert out_bf16.dtype == jnp.bfloat16
    assert jnp.allclose(out_bf16.astype(jnp.float32), ref, atol=1e-2, rtol=1e-2), \
        "mismatch (bf16)"

    print("KERNEL_OK")
</pallas_src>

<mosaic_0001>
module attributes {stable_mosaic.version = 11 : i64} {
  func.func @_fused_bf_dd_kernel(%arg0: i32, %arg1: memref<16x3xf32, #tpu.memory_space<vmem>>, %arg2: memref<3x256xf32, #tpu.memory_space<vmem>>, %arg3: memref<16x256xf32, #tpu.memory_space<vmem>>) attributes {dimension_semantics = [#tpu.dimension_semantics<parallel>], iteration_bounds = array<i64: 1>, scalar_prefetch = 0 : i64, scratch_operands = 0 : i64, tpu.core_type = #tpu.core_type<tc>, window_params = [{transform_indices = @transform_0, window_bounds = array<i64: 16, 3>}, {pipeline_mode = #tpu.pipeline_mode<synchronous>, transform_indices = @transform_1, window_bounds = array<i64: 3, 256>}, {transform_indices = @transform_2, window_bounds = array<i64: 16, 256>}]} {
    %c0 = arith.constant 0 : index
    %c0_0 = arith.constant 0 : index
    %0 = vector.load %arg2[%c0, %c0_0] : memref<3x256xf32, #tpu.memory_space<vmem>>, vector<3x256xf32>
    %c0_i32 = arith.constant 0 : i32
    %c16_i32 = arith.constant 16 : i32
    %1 = arith.muli %c0_i32, %c16_i32 : i32
    %2 = tpu.assume_multiple %1, 16 : i32
    %3 = arith.index_cast %2 : i32 to index
    %c0_1 = arith.constant 0 : index
    %4 = vector.load %arg1[%3, %c0_1] : memref<16x3xf32, #tpu.memory_space<vmem>>, vector<16x3xf32>
    %5 = vector.extract_strided_slice %4 {offsets = [0, 0], sizes = [16, 1], strides = [1, 1]} : vector<16x3xf32> to vector<16x1xf32>
    %cst = arith.constant 2.82842708 : f32
    %6 = vector.broadcast %cst : f32 to vector<16x1xf32>
    %7 = arith.mulf %5, %6 : vector<16x1xf32>
    %8 = vector.extract_strided_slice %0 {offsets = [0, 0], sizes = [1, 256], strides = [1, 1]} : vector<3x256xf32> to vector<1x256xf32>
    %9 = vector.broadcast %7 : vector<16x1xf32> to vector<16x256xf32>
    %10 = vector.broadcast %8 : vector<1x256xf32> to vector<16x256xf32>
    %11 = arith.subf %9, %10 : vector<16x256xf32>
    %12 = arith.mulf %11, %11 : vector<16x256xf32>
    %13 = vector.extract_strided_slice %4 {offsets = [0, 1], sizes = [16, 1], strides = [1, 1]} : vector<16x3xf32> to vector<16x1xf32>
    %cst_2 = arith.constant 2.82842708 : f32
    %14 = vector.broadcast %cst_2 : f32 to vector<16x1xf32>
    %15 = arith.mulf %13, %14 : vector<16x1xf32>
    %16 = vector.extract_strided_slice %0 {offsets = [1, 0], sizes = [1, 256], strides = [1, 1]} : vector<3x256xf32> to vector<1x256xf32>
    %17 = vector.broadcast %15 : vector<16x1xf32> to vector<16x256xf32>
    %18 = vector.broadcast %16 : vector<1x256xf32> to vector<16x256xf32>
    %19 = arith.subf %17, %18 : vector<16x256xf32>
    %20 = arith.mulf %19, %19 : vector<16x256xf32>
    %21 = arith.addf %12, %20 : vector<16x256xf32>
    %22 = vector.extract_strided_slice %4 {offsets = [0, 2], sizes = [16, 1], strides = [1, 1]} : vector<16x3xf32> to vector<16x1xf32>
    %cst_3 = arith.constant 2.82842708 : f32
    %23 = vector.broadcast %cst_3 : f32 to vector<16x1xf32>
    %24 = arith.mulf %22, %23 : vector<16x1xf32>
    %25 = vector.extract_strided_slice %0 {offsets = [2, 0], sizes = [1, 256], strides = [1, 1]} : vector<3x256xf32> to vector<1x256xf32>
    %26 = vector.broadcast %24 : vector<16x1xf32> to vector<16x256xf32>
    %27 = vector.broadcast %25 : vector<1x256xf32> to vector<16x256xf32>
    %28 = arith.subf %26, %27 : vector<16x256xf32>
    %29 = arith.mulf %28, %28 : vector<16x256xf32>
    %30 = arith.addf %21, %29 : vector<16x256xf32>
    %cst_4 = arith.constant 0.000000e+00 : f32
    %31 = vector.broadcast %cst_4 : f32 to vector<16x256xf32>
    %32 = arith.subf %31, %30 : vector<16x256xf32>
    %33 = math.exp %32 : vector<16x256xf32>
    %34 = arith.index_cast %2 : i32 to index
    %c0_5 = arith.constant 0 : index
    %35 = vector.load %arg3[%34, %c0_5] : memref<16x256xf32, #tpu.memory_space<vmem>>, vector<16x256xf32>
    tpu.vector_store %arg3[%34, %c0_5], %33 {strides = array<i32>} : memref<16x256xf32, #tpu.memory_space<vmem>>, vector<16x256xf32>,
    %c1_i32 = arith.constant 1 : i32
    return
  }
  func.func @transform_0(%arg0: i32) -> (i32, i32) {
    %c0_i32 = arith.constant 0 : i32
    %c0_i32_0 = arith.constant 0 : i32
    return %arg0, %c0_i32 : i32, i32
  }
  func.func @transform_1(%arg0: i32) -> (i32, i32) {
    %c0_i32 = arith.constant 0 : i32
    %c0_i32_0 = arith.constant 0 : i32
    %c0_i32_1 = arith.constant 0 : i32
    return %c0_i32, %c0_i32_0 : i32, i32
  }
  func.func @transform_2(%arg0: i32) -> (i32, i32) {
    %c0_i32 = arith.constant 0 : i32
    %c0_i32_0 = arith.constant 0 : i32
    return %arg0, %c0_i32 : i32, i32
  }
}

</mosaic_0001>

<llo_original>
// kernel: tpu_custom_call.1
$region0: #{tpu_custom_call.1}
  #allocation0 [shape = 'u32[]', space=smem, size = 0x4, offset = 0x4, fixed_abs, tag = 'smem constant byte address 0x4 - core index']
  #allocation1 [shape = 'u32[144,128]{1,0:T(1,128)}', space=vmem, size = 0x12000, scoped, tag = 'internal scratch']
  %s0 = inlined_call_operand.vmem [shape: f32[16,3], index: 0, kind: input, shape index: {}]
  %s1 = inlined_call_operand.vmem [shape: f32[3,256], index: 1, kind: input, shape index: {}]
  %s2 = inlined_call_operand.hbm [shape: f32[16,256], index: 2, kind: output, shape index: {}]
  %s3 = sld [smem:[#allocation0]]
  $region18: #{tpu_custom_call.1} parent=0
    _
  %s5 = ssub.s32 1, %s3
  %s6 = scalar_select 0, %s5, %s3
  $region1: #{tpu_custom_call.1} parent=0
    #allocation2 [shape = 'u8[16384]{0}', space=vmem, size = 0x4000, scoped, tag = 'output window, operand 0, single buffered']
    #allocation3 [shape = 's32[1]{0}', space=sflag, size = 0x4, scoped, tag = 'scoped memory for tpu_custom_call.1']
    %7 = vsyncpa [#allocation3], 0
    // Predicated region
    $region2: #{tpu_custom_call.1} parent=1 // pred_check
      _
    $region3: #{tpu_custom_call.1} parent=1 // pred_check_branch
      %9 = sbr.rel (0) target = $region5
    $region4: #{tpu_custom_call.1} parent=1 // pred_region
      _
    $region5: #{tpu_custom_call.1} parent=1 // pred_fallthru
      _
    // Predicated region
    $region6: #{tpu_custom_call.1} parent=1 // pred_check
      _
    $region7: #{tpu_custom_call.1} parent=1 // pred_check_branch
      %11 = sbr.rel (0) target = $region9
    $region8: #{tpu_custom_call.1} parent=1 // pred_region
      _
    $region9: #{tpu_custom_call.1} parent=1 // pred_fallthru
      _
    %v12 = vld [vmem:[%s1] sm:$0x77]
    %v13 = vld [vmem:[%s0] sm:$0xff]
    %v14 = vld [vmem:[%s0 + $0x8] sm:$0xff]
    %v15 = vmul.f32 %v13, 2.828427
    %v16 = vmul.f32 %v14, 2.828427
    %18 = vset.pattern.permute.xlu0 0
    %19 = vperm.xlu0 %18, %v15
    %v20 = vpop.permute.xlu0 %19
    %23 = vset.pattern.permute.xlu0 0
    %24 = vperm.xlu0 %23, %v16
    %v25 = vpop.permute.xlu0 %24
    %v28 = vlaneseq
    %v29 = vshrl.u32 %v28, 7
    %v30 = vsub.s32 0, %v29
    %v31 = vrot.slane %v12, %v30
    %v32 = vlaneseq
    %v33 = vshrl.u32 %v32, 7
    %v34 = vsub.s32 4, %v33
    %v35 = vrot.slane %v12, %v34
    %v38 = vlaneseq
    %v39 = vshrl.u32 %v38, 7
    %v40 = vsub.s32 0, %v39
    %v41 = vrot.slane %v31, %v40
    %v42 = vlaneseq
    %v43 = vshrl.u32 %v42, 7
    %v44 = vsub.s32 0, %v43
    %v45 = vrot.slane %v35, %v44
    %v46 = vsub.f32 %v20, %v41
    %v47 = vsub.f32 %v20, %v45
    %v48 = vsub.f32 %v25, %v41
    %v49 = vsub.f32 %v25, %v45
    %v50 = vmul.f32 %v46, %v46
    %v51 = vmul.f32 %v47, %v47
    %v52 = vmul.f32 %v48, %v48
    %v53 = vmul.f32 %v49, %v49
    %54 = vset.pattern.permute.xlu0 1
    %55 = vperm.xlu0 %54, %v15
    %v56 = vpop.permute.xlu0 %55
    %58 = vset.pattern.permute.xlu0 1
    %59 = vperm.xlu0 %58, %v16
    %v60 = vpop.permute.xlu0 %59
    %v62 = vlaneseq
    %v63 = vshrl.u32 %v62, 7
    %v64 = vsub.s32 1, %v63
    %v65 = vrot.slane %v12, %v64
    %v66 = vlaneseq
    %v67 = vshrl.u32 %v66, 7
    %v68 = vsub.s32 5, %v67
    %v69 = vrot.slane %v12, %v68
    %v72 = vlaneseq
    %v73 = vshrl.u32 %v72, 7
    %v74 = vsub.s32 1, %v73
    %v75 = vrot.slane %v65, %v74
    %v76 = vlaneseq
    %v77 = vshrl.u32 %v76, 7
    %v78 = vsub.s32 1, %v77
    %v79 = vrot.slane %v69, %v78
    %v80 = vsub.f32 %v56, %v75
    %v81 = vsub.f32 %v56, %v79
    %v82 = vsub.f32 %v60, %v75
    %v83 = vsub.f32 %v60, %v79
    %v84 = vmul.f32 %v80, %v80
    %v85 = vmul.f32 %v81, %v81
    %v86 = vmul.f32 %v82, %v82
    %v87 = vmul.f32 %v83, %v83
    %v88 = vadd.f32 %v50, %v84
    %v89 = vadd.f32 %v51, %v85
    %v90 = vadd.f32 %v52, %v86
    %v91 = vadd.f32 %v53, %v87
    %92 = vset.pattern.permute.xlu0 2
    %93 = vperm.xlu0 %92, %v15
    %v94 = vpop.permute.xlu0 %93
    %96 = vset.pattern.permute.xlu0 2
    %97 = vperm.xlu0 %96, %v16
    %v98 = vpop.permute.xlu0 %97
    %v100 = vlaneseq
    %v101 = vshrl.u32 %v100, 7
    %v102 = vsub.s32 2, %v101
    %v103 = vrot.slane %v12, %v102
    %v104 = vlaneseq
    %v105 = vshrl.u32 %v104, 7
    %v106 = vsub.s32 6, %v105
    %v107 = vrot.slane %v12, %v106
    %v110 = vlaneseq
    %v111 = vshrl.u32 %v110, 7
    %v112 = vsub.s32 2, %v111
    %v113 = vrot.slane %v103, %v112
    %v114 = vlaneseq
    %v115 = vshrl.u32 %v114, 7
    %v116 = vsub.s32 2, %v115
    %v117 = vrot.slane %v107, %v116
    %v118 = vsub.f32 %v94, %v113
    %v119 = vsub.f32 %v94, %v117
    %v120 = vsub.f32 %v98, %v113
    %v121 = vsub.f32 %v98, %v117
    %v122 = vmul.f32 %v118, %v118
    %v123 = vmul.f32 %v119, %v119
    %v124 = vmul.f32 %v120, %v120
    %v125 = vmul.f32 %v121, %v121
    %v126 = vadd.f32 %v88, %v122
    %v127 = vadd.f32 %v89, %v123
    %v128 = vadd.f32 %v90, %v124
    %v129 = vadd.f32 %v91, %v125
    %v130 = vsub.f32 0.0, %v126
    %v131 = vsub.f32 0.0, %v127
    %v132 = vsub.f32 0.0, %v128
    %v133 = vsub.f32 0.0, %v129
    %v134 = vmul.f32 %v130, 1.442695
    %v135 = vpow.pop %v134
    %v136 = vmul.f32 %v131, 1.442695
    %v137 = vpow.pop %v136
    %v138 = vmul.f32 %v132, 1.442695
    %v139 = vpow.pop %v138
    %v140 = vmul.f32 %v133, 1.442695
    %v141 = vpow.pop %v140
    %s142 = smul.u32 0, 2
    %s143 = smul.addr %s142, 8
    %s144 = scalar_lea.vmem [#allocation2], %s143
    %145 = vst [vmem:[%s144] sm:$0xff] %v135
    %146 = vst [vmem:[%s144 + $0x8] sm:$0xff] %v137
    %147 = vst [vmem:[%s144 + $0x10] sm:$0xff] %v139
    %148 = vst [vmem:[%s144 + $0x18] sm:$0xff] %v141
    // Predicated region
    $region10: #{tpu_custom_call.1} parent=1 // pred_check
      _
    $region11: #{tpu_custom_call.1} parent=1 // pred_check_branch
      %150 = sbr.rel (0) target = $region13
    $region12: #{tpu_custom_call.1} parent=1 // pred_region
      %s152 = ssub.s32 512, 512
      %153 = vsyncadd [#allocation3], %s152
      %s154 = sshll.u32 [#allocation2], 4
      %s155 = int_to_ptr.vmem [resolvable:$true] %s154
      %160 = dma.vmem_to_hbm [thread:$0]  %s155, 512, %s2, [#allocation3], 256, 256, 16
    $region13: #{tpu_custom_call.1} parent=1 // pred_fallthru
      _
    // Predicated region
    $region14: #{tpu_custom_call.1} parent=1 // pred_check
      _
    $region15: #{tpu_custom_call.1} parent=1 // pred_check_branch
      %162 = sbr.rel (0) target = $region17
    $region16: #{tpu_custom_call.1} parent=1 // pred_region
      %163 = dma.done [#allocation3], 512
    $region17: #{tpu_custom_call.1} parent=1 // pred_fallthru
      _
    %164 = vsyncpa [#allocation3], 1

</llo_original>
